<compile_context>
chip_gen: v7x
topology: tpu7x:2x2x1
jax: 0.10.0
libtpu: 0.0.40
codegen_flags: <defaults>
</compile_context>

<pallas_src>
import jax
import jax.numpy as jnp
from jax.experimental import pallas as pl
from jax.experimental.pallas import tpu as pltpu

_VMEM_LIMIT = 32 * 1024 * 1024  # raise v5e's 16 MiB scoped default; safe on v6e/v7x


def _pick_lane_tile(total, max_tile):
    """128-aligned lane tile <= max_tile; aim for >=2 grid steps (v7x megacore).

    For small extents (< 256) the block must equal the full array dim anyway,
    so return the full extent (legal single-step grid).
    """
    if total < 256:
        return total
    half = (total // 2 // 128) * 128
    return max(min(max_tile, half), 128)


# ----------------------------- kernels ------------------------------------- #

def _node_kernel(aggT_ref, wencT_ref, bencT_ref, w1T_ref, hT_ref):
    """Per node-tile (nodes on the lane axis):
         embT = ReLU(W_enc @ aggT + b_enc)                (D, tn)  f32 acc
         hT   = [W1_src; W1_tgt] @ embT                   (2M, tn) single fused matmul
       Output stored bf16 (halves writeback + downstream gather/edge traffic).
    """
    embT = jnp.dot(wencT_ref[...], aggT_ref[...].astype(jnp.bfloat16),
                   preferred_element_type=jnp.float32) + bencT_ref[...]
    embT = jnp.maximum(embT, 0.0).astype(jnp.bfloat16)
    hT_ref[...] = jnp.dot(w1T_ref[...], embT,
                          preferred_element_type=jnp.float32).astype(hT_ref.dtype)


def _edge_kernel(hs_ref, ht_ref, b1_ref, w2_ref, b2_ref, eps_ref, ew_ref,
                 aug_ref, new_ref):
    """Per edge-tile (edges on the lane axis):
         h      = ReLU(hs + ht + b1)                               (M, te)  f32
         logits = sum_M(h * w2) + b2        (VPU mul + XLU reduce) (1, te)
         noise  = log(eps) - log1p(-eps)
         aug    = sigmoid(noise + logits)   (temperature = 1.0)
         new_ew = edge_weight * aug
    """
    hs = hs_ref[...].astype(jnp.float32)
    ht = ht_ref[...].astype(jnp.float32)
    h = jnp.maximum(hs + ht + b1_ref[...], 0.0)
    logits = jnp.sum(h * w2_ref[...], axis=0, keepdims=True) + b2_ref[...]
    eps = eps_ref[...]
    noise = jnp.log(eps) - jnp.log1p(-eps)
    aug = jax.nn.sigmoid(noise + logits)
    aug_ref[...] = aug
    new_ref[...] = ew_ref[...] * aug


# ----------------------------- wrappers ------------------------------------ #

def node_projection_forward(aggT, params, lane_tile=1024):
    """aggT: (F, N) f32 -> hT: (2M, N) bf16.

    Rows [:M] are W1_src @ emb, rows [M:] are W1_tgt @ emb,
    emb = ReLU(W_enc @ aggT + b_enc).
    """
    f, n = aggT.shape
    d = params["w_encT"].shape[0]
    m2 = params["w1_stackT"].shape[0]          # 2 * mlp_dim
    tn = _pick_lane_tile(n, lane_tile)

    full = lambda shape: pl.BlockSpec(shape, lambda i: (0, 0))
    tile = lambda rows: pl.BlockSpec((rows, tn), lambda i: (0, i))

    return pl.pallas_call(
        _node_kernel,
        out_shape=jax.ShapeDtypeStruct((m2, n), jnp.bfloat16),
        grid=(pl.cdiv(n, tn),),
        in_specs=[tile(f), full((d, f)), full((d, 1)), full((m2, d))],
        out_specs=tile(m2),
        compiler_params=pltpu.CompilerParams(
            dimension_semantics=("parallel",),
            vmem_limit_bytes=_VMEM_LIMIT),
    )(aggT, params["w_encT"], params["b_encT"], params["w1_stackT"])


def edge_mlp_forward(hsT_g, htT_g, params, eps_row, ew_row, lane_tile=4096):
    """hsT_g/htT_g: (M, E) bf16, eps/ew: (1, E) f32 -> (aug, new_ew): (1, E) f32."""
    m, e = hsT_g.shape
    te = _pick_lane_tile(e, lane_tile)

    full = lambda shape: pl.BlockSpec(shape, lambda i: (0, 0))
    # TODO(synk): if profiling shows exposed DMA on the two (M, te) streams,
    # sweep pipeline_mode=pl.Buffered(3) on tile_me only.
    tile_me = pl.BlockSpec((m, te), lambda i: (0, i))
    tile_1e = pl.BlockSpec((1, te), lambda i: (0, i))

    return pl.pallas_call(
        _edge_kernel,
        out_shape=(jax.ShapeDtypeStruct((1, e), jnp.float32),
                   jax.ShapeDtypeStruct((1, e), jnp.float32)),
        grid=(pl.cdiv(e, te),),
        in_specs=[tile_me, tile_me, full((m, 1)), full((m, 1)), full((1, 1)),
                  tile_1e, tile_1e],
        out_specs=(tile_1e, tile_1e),
        compiler_params=pltpu.CompilerParams(
            dimension_semantics=("parallel",),
            vmem_limit_bytes=_VMEM_LIMIT),
    )(hsT_g, htT_g, params["b1T"], params["w2T"], params["b2"], eps_row, ew_row)


def structure_augmentor_forward(params, x, edge_index, edge_weight, num_graphs, eps):
    """Mirrors StructureAugmentor.forward.

    Returns (aug_edge_weight, new_edge_weight), both (num_graphs, E // num_graphs).
    """
    n, f = x.shape
    m = params["b1T"].shape[0]
    src_idx, tgt_idx = edge_index[0], edge_index[1]

    # Edge-wise weighted aggregation (replaces the dense (N,N) adjacency): O(E*F).
    weighted = jnp.take(x, src_idx, axis=0) * edge_weight[:, None]        # (E, F)
    agg = jnp.zeros((n, f), jnp.float32).at[tgt_idx].add(weighted)        # (N, F)
    aggT = agg.T                                                          # (F, N) f32

    # Dense per-node work: encoder + fused first-layer MLP projection.
    hT = node_projection_forward(aggT, params)                            # (2M, N) bf16

    # Irregular per-edge column gathers stay in XLA glue (bf16 streams).
    # TODO(synk): for production E >> N, fuse these gathers into the edge kernel
    # (keep hT resident in VMEM + PrefetchScalarGridSpec over src/tgt indices).
    hsT_g = jnp.take(hT[:m], src_idx, axis=1)                             # (M, E) bf16
    htT_g = jnp.take(hT[m:], tgt_idx, axis=1)                             # (M, E) bf16

    aug_row, new_row = edge_mlp_forward(
        hsT_g, htT_g, params,
        eps.reshape(1, -1).astype(jnp.float32),
        edge_weight.reshape(1, -1).astype(jnp.float32))

    aug_edge_weight = aug_row.reshape(num_graphs, -1)
    new_edge_weight = new_row.reshape(num_graphs, -1)
    return aug_edge_weight, new_edge_weight


# ----------------------------- init helpers -------------------------------- #

def xavier_uniform(key, shape):
    # shape is the torch Linear weight shape: (out_features, in_features)
    fan_out, fan_in = shape
    limit = (6.0 / (fan_in + fan_out)) ** 0.5
    return jax.random.uniform(key, shape, jnp.float32, -limit, limit)


def init_params(key, feat_dim, out_dim, mlp_dim):
    k_enc, k_w1, k_w2 = jax.random.split(key, 3)
    # encoder Linear(feat_dim -> out_dim); torch weight (out_dim, feat_dim)
    w_enc = xavier_uniform(k_enc, (out_dim, feat_dim))                 # (D, F)
    # mlp Linear(2*out_dim -> mlp_dim); torch weight (mlp_dim, 2*out_dim)
    w1 = xavier_uniform(k_w1, (mlp_dim, 2 * out_dim))                  # (M, 2D)
    # cat([src, tgt], dim=1) @ W1.T == W1[:, :D] @ srcT + W1[:, D:] @ tgtT
    # Stack the two halves into one (2M, D) weight for a single fused matmul.
    w1_stack = jnp.concatenate([w1[:, :out_dim], w1[:, out_dim:]], axis=0)  # (2M, D)
    # mlp Linear(mlp_dim -> 1); torch weight (1, mlp_dim)
    w2 = xavier_uniform(k_w2, (1, mlp_dim))                            # (1, M)
    return dict(
        w_encT=w_enc.astype(jnp.bfloat16),                 # MXU operand (D, F)
        b_encT=jnp.zeros((out_dim, 1), jnp.float32),
        w1_stackT=w1_stack.astype(jnp.bfloat16),           # MXU operand (2M, D)
        b1T=jnp.zeros((mlp_dim, 1), jnp.float32),
        w2T=w2.T.astype(jnp.float32),                      # (M, 1), VPU operand
        b2=jnp.zeros((1, 1), jnp.float32),
    )


# ----------------------------- main ----------------------------------------- #

if __name__ == "__main__":
    key = jax.random.PRNGKey(0)
    k_param, k_x, k_ew, k_eps = jax.random.split(key, 4)

    num_graphs = 2
    nodes_per_graph = 8
    n_nodes = num_graphs * nodes_per_graph          # 16
    feat_dim = 8
    out_dim = 16                                    # encoder.out_dim
    mlp_dim = 64
    edges_per_graph = 2 * nodes_per_graph           # 16 (bidirectional ring)
    n_edges = num_graphs * edges_per_graph          # 32

    # deterministic bidirectional-ring edge structure per graph
    src_list, tgt_list = [], []
    for g in range(num_graphs):
        base = g * nodes_per_graph
        for i in range(nodes_per_graph):
            src_list.append(base + i)
            tgt_list.append(base + (i + 1) % nodes_per_graph)
        for i in range(nodes_per_graph):
            src_list.append(base + (i + 1) % nodes_per_graph)
            tgt_list.append(base + i)
    edge_index = jnp.array([src_list, tgt_list], dtype=jnp.int32)

    x = jax.random.normal(k_x, (n_nodes, feat_dim), jnp.float32)
    edge_weight = jax.random.uniform(k_ew, (n_edges,), jnp.float32, 0.5, 1.5)

    # eps = (bias - (1 - bias)) * rand + (1 - bias), bias = 1e-4  (torch.rand analogue)
    bias_v = 0.0 + 0.0001
    u = jax.random.uniform(k_eps, (n_edges,), jnp.float32)
    eps = (bias_v - (1.0 - bias_v)) * u + (1.0 - bias_v)

    params = init_params(k_param, feat_dim, out_dim, mlp_dim)

    aug_edge_weight, new_edge_weight = structure_augmentor_forward(
        params, x, edge_index, edge_weight, num_graphs, eps)
    jax.block_until_ready((aug_edge_weight, new_edge_weight))

    assert aug_edge_weight.shape == (num_graphs, edges_per_graph)
    assert new_edge_weight.shape == (num_graphs, edges_per_graph)
    assert bool(jnp.all(jnp.isfinite(aug_edge_weight)))
    assert bool(jnp.all(jnp.isfinite(new_edge_weight)))
    # sigmoid may round to exactly 0.0 / 1.0 in f32, so check the closed interval
    assert bool(jnp.all((aug_edge_weight >= 0.0) & (aug_edge_weight <= 1.0)))

    print("KERNEL_OK")
</pallas_src>

<mosaic_0001>
module attributes {stable_mosaic.version = 11 : i64} {
  func.func @_node_kernel(%arg0: i32, %arg1: memref<8x16xf32, #tpu.memory_space<vmem>>, %arg2: memref<16x8xbf16, #tpu.memory_space<vmem>>, %arg3: memref<16x1xf32, #tpu.memory_space<vmem>>, %arg4: memref<128x16xbf16, #tpu.memory_space<vmem>>, %arg5: memref<128x16xbf16, #tpu.memory_space<vmem>>) attributes {dimension_semantics = [#tpu.dimension_semantics<parallel>], iteration_bounds = array<i64: 1>, scalar_prefetch = 0 : i64, scratch_operands = 0 : i64, tpu.core_type = #tpu.core_type<tc>, window_params = [{transform_indices = @transform_0, window_bounds = array<i64: 8, 16>}, {pipeline_mode = #tpu.pipeline_mode<synchronous>, transform_indices = @transform_1, window_bounds = array<i64: 16, 8>}, {pipeline_mode = #tpu.pipeline_mode<synchronous>, transform_indices = @transform_2, window_bounds = array<i64: 16, 1>}, {pipeline_mode = #tpu.pipeline_mode<synchronous>, transform_indices = @transform_3, window_bounds = array<i64: 128, 16>}, {transform_indices = @transform_4, window_bounds = array<i64: 128, 16>}]} {
    %c0 = arith.constant 0 : index
    %c0_0 = arith.constant 0 : index
    %0 = vector.load %arg2[%c0, %c0_0] : memref<16x8xbf16, #tpu.memory_space<vmem>>, vector<16x8xbf16>
    %c0_1 = arith.constant 0 : index
    %c0_2 = arith.constant 0 : index
    %1 = vector.load %arg1[%c0_1, %c0_2] : memref<8x16xf32, #tpu.memory_space<vmem>>, vector<8x16xf32>
    %2 = arith.truncf %1 : vector<8x16xf32> to vector<8x16xbf16>
    %cst = arith.constant dense<0.000000e+00> : vector<16x16xf32>
    %3 = tpu.matmul %0, %2, %cst {dimension_numbers = #tpu.dot_dimension_numbers<[1], [0], [0], [1], [0, 0, 1, 1], [], []>} : vector<16x8xbf16>, vector<8x16xbf16>, vector<16x16xf32> -> vector<16x16xf32>
    %c0_3 = arith.constant 0 : index
    %c0_4 = arith.constant 0 : index
    %4 = vector.load %arg3[%c0_3, %c0_4] : memref<16x1xf32, #tpu.memory_space<vmem>>, vector<16x1xf32>
    %5 = vector.broadcast %4 : vector<16x1xf32> to vector<16x16xf32>
    %6 = arith.addf %3, %5 : vector<16x16xf32>
    %cst_5 = arith.constant 0.000000e+00 : f32
    %7 = vector.broadcast %cst_5 : f32 to vector<16x16xf32>
    %8 = arith.maximumf %6, %7 : vector<16x16xf32>
    %9 = arith.truncf %8 : vector<16x16xf32> to vector<16x16xbf16>
    %c0_6 = arith.constant 0 : index
    %c0_7 = arith.constant 0 : index
    %10 = vector.load %arg4[%c0_6, %c0_7] : memref<128x16xbf16, #tpu.memory_space<vmem>>, vector<128x16xbf16>
    %cst_8 = arith.constant dense<0.000000e+00> : vector<128x16xf32>
    %11 = tpu.matmul %10, %9, %cst_8 {dimension_numbers = #tpu.dot_dimension_numbers<[1], [0], [0], [1], [0, 0, 1, 1], [], []>} : vector<128x16xbf16>, vector<16x16xbf16>, vector<128x16xf32> -> vector<128x16xf32>
    %12 = arith.truncf %11 : vector<128x16xf32> to vector<128x16xbf16>
    %c0_9 = arith.constant 0 : index
    %c0_10 = arith.constant 0 : index
    %13 = vector.load %arg5[%c0_9, %c0_10] : memref<128x16xbf16, #tpu.memory_space<vmem>>, vector<128x16xbf16>
    tpu.vector_store %arg5[%c0_9, %c0_10], %12 {strides = array<i32>} : memref<128x16xbf16, #tpu.memory_space<vmem>>, vector<128x16xbf16>,
    return
  }
  func.func @transform_0(%arg0: i32) -> (i32, i32) {
    %c0_i32 = arith.constant 0 : i32
    %c0_i32_0 = arith.constant 0 : i32
    return %c0_i32, %arg0 : i32, i32
  }
  func.func @transform_1(%arg0: i32) -> (i32, i32) {
    %c0_i32 = arith.constant 0 : i32
    %c0_i32_0 = arith.constant 0 : i32
    %c0_i32_1 = arith.constant 0 : i32
    return %c0_i32, %c0_i32_0 : i32, i32
  }
  func.func @transform_2(%arg0: i32) -> (i32, i32) {
    %c0_i32 = arith.constant 0 : i32
    %c0_i32_0 = arith.constant 0 : i32
    %c0_i32_1 = arith.constant 0 : i32
    return %c0_i32, %c0_i32_0 : i32, i32
  }
  func.func @transform_3(%arg0: i32) -> (i32, i32) {
    %c0_i32 = arith.constant 0 : i32
    %c0_i32_0 = arith.constant 0 : i32
    %c0_i32_1 = arith.constant 0 : i32
    return %c0_i32, %c0_i32_0 : i32, i32
  }
  func.func @transform_4(%arg0: i32) -> (i32, i32) {
    %c0_i32 = arith.constant 0 : i32
    %c0_i32_0 = arith.constant 0 : i32
    return %c0_i32, %arg0 : i32, i32
  }
}

</mosaic_0001>

<llo_original>
// kernel: tpu_custom_call.1
$region0: #{tpu_custom_call.1}
  #allocation0 [shape = 'u32[]', space=smem, size = 0x4, offset = 0x4, fixed_abs, tag = 'smem constant byte address 0x4 - core index']
  #allocation1 [shape = 'u32[144,128]{1,0:T(1,128)}', space=vmem, size = 0x12000, scoped, tag = 'internal scratch']
  %s0 = inlined_call_operand.vmem [shape: f32[8,16], index: 0, kind: input, shape index: {}]
  %s1 = inlined_call_operand.vmem [shape: bf16[16,8], index: 1, kind: input, shape index: {}]
  %s2 = inlined_call_operand.vmem [shape: f32[16,1], index: 2, kind: input, shape index: {}]
  %s3 = inlined_call_operand.vmem [shape: bf16[128,16], index: 3, kind: input, shape index: {}]
  %s4 = inlined_call_operand.vmem [shape: bf16[128,16], index: 4, kind: output, shape index: {}]
  %s5 = sld [smem:[#allocation0]]
  $region26: #{tpu_custom_call.1} parent=0
    _
  %s7 = ssub.s32 1, %s5
  %s8 = scalar_select 0, %s7, %s5
  // Predicated region
  $region2: #{tpu_custom_call.1} parent=0 // pred_check
    _
  $region3: #{tpu_custom_call.1} parent=0 // pred_check_branch
    %10 = sbr.rel (0) target = $region5
  $region4: #{tpu_custom_call.1} parent=0 // pred_region
    _
  $region5: #{tpu_custom_call.1} parent=0 // pred_fallthru
    _
  // Predicated region
  $region6: #{tpu_custom_call.1} parent=0 // pred_check
    _
  $region7: #{tpu_custom_call.1} parent=0 // pred_check_branch
    %12 = sbr.rel (0) target = $region9
  $region8: #{tpu_custom_call.1} parent=0 // pred_region
    _
  $region9: #{tpu_custom_call.1} parent=0 // pred_fallthru
    _
  // Predicated region
  $region10: #{tpu_custom_call.1} parent=0 // pred_check
    _
  $region11: #{tpu_custom_call.1} parent=0 // pred_check_branch
    %14 = sbr.rel (0) target = $region13
  $region12: #{tpu_custom_call.1} parent=0 // pred_region
    _
  $region13: #{tpu_custom_call.1} parent=0 // pred_fallthru
    _
  // Predicated region
  $region14: #{tpu_custom_call.1} parent=0 // pred_check
    _
  $region15: #{tpu_custom_call.1} parent=0 // pred_check_branch
    %16 = sbr.rel (0) target = $region17
  $region16: #{tpu_custom_call.1} parent=0 // pred_region
    _
  $region17: #{tpu_custom_call.1} parent=0 // pred_fallthru
    _
  %v18 = vld [vmem:[%s1] sm:$0xf]
  %v19 = vld [vmem:[%s1 + $0x4] sm:$0xf]
  %v20 = vld [vmem:[%s0] sm:$0xff]
  %v21 = vpack.c.bf16 %v20, %v20
  %v22 = vld [vmem:[%s2] sm:$0xff]
  %v23 = vld [vmem:[%s2 + $0x8] sm:$0xff]
  %25 = vset.pattern.permute.xlu0 0
  %26 = vperm.xlu0 %25, %v22
  %v27 = vpop.permute.xlu0 %26
  %30 = vset.pattern.permute.xlu0 0
  %31 = vperm.xlu0 %30, %v23
  %v32 = vpop.permute.xlu0 %31
  %v36 = vunpack.c.l.b16 %v18
  %v37 = vunpack.c.l.b16 %v19
  %v38 = vpack.c.b16 %v37, %v36
  %vm39 = vcmask 64512
  %v41 = vsel %vm39, %v38, 0
  %vm43 = vcmask 1043456
  %v45 = vsel %vm43, %v21, 0
  %47 = vmatprep.subr.bf16.mxu0 0
  %48 = vmatpush1.bf16.msra.mxu0 %v45
  %49 = vmatprep.subr.bf16.mxu0 0
  %50 = vmatpush1.bf16.msra.mxu0 0
  %51 = vmatprep.subr.bf16.mxu0 0
  %52 = vmatpush1.bf16.msra.mxu0 0
  %53 = vmatprep.subr.bf16.mxu0 0
  %54 = vmatpush1.bf16.msra.mxu0 0
  %55 = vmatprep.subr.bf16.mxu0 0
  %56 = vmatpush1.bf16.msra.mxu0 0
  %57 = vmatprep.subr.bf16.mxu0 0
  %58 = vmatpush1.bf16.msra.mxu0 0
  %59 = vmatprep.subr.bf16.mxu0 0
  %60 = vmatpush1.bf16.msra.mxu0 0
  %61 = vmatprep.subr.bf16.mxu0 0
  %62 = vmatpush1.bf16.msra.mxu0 0
  %63 = vmatprep.subr.bf16.mxu0 0
  %64 = vmatpush1.bf16.msra.mxu0 0
  %65 = vmatprep.subr.bf16.mxu0 0
  %66 = vmatpush1.bf16.msra.mxu0 0
  %67 = vmatprep.subr.bf16.mxu0 0
  %68 = vmatpush1.bf16.msra.mxu0 0
  %69 = vmatprep.subr.bf16.mxu0 0
  %70 = vmatpush1.bf16.msra.mxu0 0
  %71 = vmatprep.subr.bf16.mxu0 0
  %72 = vmatpush1.bf16.msra.mxu0 0
  %73 = vmatprep.subr.bf16.mxu0 0
  %74 = vmatpush1.bf16.msra.mxu0 0
  %75 = vmatprep.subr.bf16.mxu0 0
  %76 = vmatpush1.bf16.msra.mxu0 0
  %77 = vmatprep.subr.bf16.mxu0 0
  %78 = vmatpush1.bf16.msra.mxu0 0
  %79 = vmatprep.mubr.bf16.mxu0 0
  %80 = vmatmul.mubr.bf16.gmra.mrb[0].mxu0 %v41
  %v81 = vpop.f32.mrb[0].mxu0
  %v82 = vadd.f32 %v27, %v81
  %v83 = vpop.f32.mrb[0].mxu0
  %v84 = vpop.f32.mrb[0].mxu0
  %v85 = vadd.f32 %v32, %v84
  %v86 = vpop.f32.mrb[0].mxu0
  %87 = vdwg.mxu0
  %v88 = vmax.f32 %v82, 0.0
  %v89 = vmax.f32 %v85, 0.0
  %v90 = vpack.c.bf16 %v89, %v88
  %v91 = vld [vmem:[%s3] sm:$0xf]
  %v92 = vld [vmem:[%s3 + $0x4] sm:$0xf]
  %v93 = vld [vmem:[%s3 + $0x8] sm:$0xf]
  %v94 = vld [vmem:[%s3 + $0xc] sm:$0xf]
  %v95 = vld [vmem:[%s3 + $0x10] sm:$0xf]
  %v96 = vld [vmem:[%s3 + $0x14] sm:$0xf]
  %v97 = vld [vmem:[%s3 + $0x18] sm:$0xf]
  %v98 = vld [vmem:[%s3 + $0x1c] sm:$0xf]
  %v99 = vld [vmem:[%s3 + $0x20] sm:$0xf]
  %v100 = vld [vmem:[%s3 + $0x24] sm:$0xf]
  %v101 = vld [vmem:[%s3 + $0x28] sm:$0xf]
  %v102 = vld [vmem:[%s3 + $0x2c] sm:$0xf]
  %v103 = vld [vmem:[%s3 + $0x30] sm:$0xf]
  %v104 = vld [vmem:[%s3 + $0x34] sm:$0xf]
  %v105 = vld [vmem:[%s3 + $0x38] sm:$0xf]
  %v106 = vld [vmem:[%s3 + $0x3c] sm:$0xf]
  %v123 = vunpack.c.l.b16 %v91
  %v124 = vunpack.c.l.b16 %v92
  %v125 = vunpack.c.l.b16 %v93
  %v126 = vunpack.c.l.b16 %v94
  %v127 = vunpack.c.l.b16 %v95
  %v128 = vunpack.c.l.b16 %v96
  %v129 = vunpack.c.l.b16 %v97
  %v130 = vunpack.c.l.b16 %v98
  %v131 = vunpack.c.l.b16 %v99
  %v132 = vunpack.c.l.b16 %v100
  %v133 = vunpack.c.l.b16 %v101
  %v134 = vunpack.c.l.b16 %v102
  %v135 = vunpack.c.l.b16 %v103
  %v136 = vunpack.c.l.b16 %v104
  %v137 = vunpack.c.l.b16 %v105
  %v138 = vunpack.c.l.b16 %v106
  %v139 = vpack.c.b16 %v124, %v123
  %v140 = vpack.c.b16 %v126, %v125
  %v141 = vpack.c.b16 %v128, %v127
  %v142 = vpack.c.b16 %v130, %v129
  %v143 = vpack.c.b16 %v132, %v131
  %v144 = vpack.c.b16 %v134, %v133
  %v145 = vpack.c.b16 %v136, %v135
  %v146 = vpack.c.b16 %v138, %v137
  %vm147 = vcmask 130048
  %v149 = vsel %vm147, %v139, 0
  %v152 = vsel %vm147, %v140, 0
  %v155 = vsel %vm147, %v141, 0
  %v158 = vsel %vm147, %v142, 0
  %v161 = vsel %vm147, %v143, 0
  %v164 = vsel %vm147, %v144, 0
  %v167 = vsel %vm147, %v145, 0
  %v170 = vsel %vm147, %v146, 0
  %172 = vmatprep.subr.bf16.mxu0 0
  %173 = vmatpush1.bf16.msra.mxu0 %v90
  %174 = vmatprep.subr.bf16.mxu0 0
  %175 = vmatpush1.bf16.msra.mxu0 0
  %176 = vmatprep.subr.bf16.mxu0 0
  %177 = vmatpush1.bf16.msra.mxu0 0
  %178 = vmatprep.subr.bf16.mxu0 0
  %179 = vmatpush1.bf16.msra.mxu0 0
  %180 = vmatprep.subr.bf16.mxu0 0
  %181 = vmatpush1.bf16.msra.mxu0 0
  %182 = vmatprep.subr.bf16.mxu0 0
  %183 = vmatpush1.bf16.msra.mxu0 0
  %184 = vmatprep.subr.bf16.mxu0 0
  %185 = vmatpush1.bf16.msra.mxu0 0
  %186 = vmatprep.subr.bf16.mxu0 0
  %187 = vmatpush1.bf16.msra.mxu0 0
  %188 = vmatprep.subr.bf16.mxu0 0
  %189 = vmatpush1.bf16.msra.mxu0 0
  %190 = vmatprep.subr.bf16.mxu0 0
  %191 = vmatpush1.bf16.msra.mxu0 0
  %192 = vmatprep.subr.bf16.mxu0 0
  %193 = vmatpush1.bf16.msra.mxu0 0
  %194 = vmatprep.subr.bf16.mxu0 0
  %195 = vmatpush1.bf16.msra.mxu0 0
  %196 = vmatprep.subr.bf16.mxu0 0
  %197 = vmatpush1.bf16.msra.mxu0 0
  %198 = vmatprep.subr.bf16.mxu0 0
  %199 = vmatpush1.bf16.msra.mxu0 0
  %200 = vmatprep.subr.bf16.mxu0 0
  %201 = vmatpush1.bf16.msra.mxu0 0
  %202 = vmatprep.subr.bf16.mxu0 0
  %203 = vmatpush1.bf16.msra.mxu0 0
  %204 = vmatprep.mubr.bf16.mxu0 0
  %205 = vmatmul.mubr.bf16.gmra.mrb[0].mxu0 %v149
  %v206 = vpop.f32.mrb[0].mxu0
  %v207 = vadd.f32 0.0, %v206
  %v208 = vpop.f32.mrb[0].mxu0
  %v209 = vpop.f32.mrb[0].mxu0
  %v210 = vadd.f32 0.0, %v209
  %v211 = vpop.f32.mrb[0].mxu0
  %212 = vmatprep.mubr.bf16.mxu0 0
  %213 = vmatmul.mubr.bf16.gmra.mrb[0].mxu0 %v152
  %v214 = vpop.f32.mrb[0].mxu0
  %v215 = vadd.f32 0.0, %v214
  %v216 = vpop.f32.mrb[0].mxu0
  %v217 = vpop.f32.mrb[0].mxu0
  %v218 = vadd.f32 0.0, %v217
  %v219 = vpop.f32.mrb[0].mxu0
  %220 = vmatprep.mubr.bf16.mxu0 0
  %221 = vmatmul.mubr.bf16.gmra.mrb[0].mxu0 %v155
  %v222 = vpop.f32.mrb[0].mxu0
  %v223 = vadd.f32 0.0, %v222
  %v224 = vpop.f32.mrb[0].mxu0
  %v225 = vpop.f32.mrb[0].mxu0
  %v226 = vadd.f32 0.0, %v225
  %v227 = vpop.f32.mrb[0].mxu0
  %228 = vmatprep.mubr.bf16.mxu0 0
  %229 = vmatmul.mubr.bf16.gmra.mrb[0].mxu0 %v158
  %v230 = vpop.f32.mrb[0].mxu0
  %v231 = vadd.f32 0.0, %v230
  %v232 = vpop.f32.mrb[0].mxu0
  %v233 = vpop.f32.mrb[0].mxu0
  %v234 = vadd.f32 0.0, %v233
  %v235 = vpop.f32.mrb[0].mxu0
  %236 = vmatprep.mubr.bf16.mxu0 0
  %237 = vmatmul.mubr.bf16.gmra.mrb[0].mxu0 %v161
  %v238 = vpop.f32.mrb[0].mxu0
  %v239 = vadd.f32 0.0, %v238
  %v240 = vpop.f32.mrb[0].mxu0
  %v241 = vpop.f32.mrb[0].mxu0
  %v242 = vadd.f32 0.0, %v241
  %v243 = vpop.f32.mrb[0].mxu0
  %244 = vmatprep.mubr.bf16.mxu0 0
  %245 = vmatmul.mubr.bf16.gmra.mrb[0].mxu0 %v164
  %v246 = vpop.f32.mrb[0].mxu0
  %v247 = vadd.f32 0.0, %v246
  %v248 = vpop.f32.mrb[0].mxu0
  %v249 = vpop.f32.mrb[0].mxu0
  %v250 = vadd.f32 0.0, %v249
  %v251 = vpop.f32.mrb[0].mxu0
  %252 = vmatprep.mubr.bf16.mxu0 0
  %253 = vmatmul.mubr.bf16.gmra.mrb[0].mxu0 %v167
  %v254 = vpop.f32.mrb[0].mxu0
  %v255 = vadd.f32 0.0, %v254
  %v256 = vpop.f32.mrb[0].mxu0
  %v257 = vpop.f32.mrb[0].mxu0
  %v258 = vadd.f32 0.0, %v257
  %v259 = vpop.f32.mrb[0].mxu0
  %260 = vmatprep.mubr.bf16.mxu0 0
  %261 = vmatmul.mubr.bf16.gmra.mrb[0].mxu0 %v170
  %v262 = vpop.f32.mrb[0].mxu0
  %v263 = vadd.f32 0.0, %v262
  %v264 = vpop.f32.mrb[0].mxu0
  %v265 = vpop.f32.mrb[0].mxu0
  %v266 = vadd.f32 0.0, %v265
  %v267 = vpop.f32.mrb[0].mxu0
  %268 = vdwg.mxu0
  %v269 = vpack.c.bf16 %v210, %v207
  %v270 = vpack.c.bf16 %v218, %v215
  %v271 = vpack.c.bf16 %v226, %v223
  %v272 = vpack.c.bf16 %v234, %v231
  %v273 = vpack.c.bf16 %v242, %v239
  %v274 = vpack.c.bf16 %v250, %v247
  %v275 = vpack.c.bf16 %v258, %v255
  %v276 = vpack.c.bf16 %v266, %v263
  %v285 = vunpack.c.l.b16 %v269
  %v286 = vunpack.c.h.b16 %v269
  %v287 = vunpack.c.l.b16 %v270
  %v288 = vunpack.c.h.b16 %v270
  %v289 = vunpack.c.l.b16 %v271
  %v290 = vunpack.c.h.b16 %v271
  %v291 = vunpack.c.l.b16 %v272
  %v292 = vunpack.c.h.b16 %v272
  %v293 = vunpack.c.l.b16 %v273
  %v294 = vunpack.c.h.b16 %v273
  %v295 = vunpack.c.l.b16 %v274
  %v296 = vunpack.c.h.b16 %v274
  %v297 = vunpack.c.l.b16 %v275
  %v298 = vunpack.c.h.b16 %v275
  %v299 = vunpack.c.l.b16 %v276
  %v300 = vunpack.c.h.b16 %v276
  %v301 = vpack.c.b16 %v285, %v285
  %v302 = vpack.c.b16 %v286, %v286
  %v303 = vpack.c.b16 %v287, %v287
  %v304 = vpack.c.b16 %v288, %v288
  %v305 = vpack.c.b16 %v289, %v289
  %v306 = vpack.c.b16 %v290, %v290
  %v307 = vpack.c.b16 %v291, %v291
  %v308 = vpack.c.b16 %v292, %v292
  %v309 = vpack.c.b16 %v293, %v293
  %v310 = vpack.c.b16 %v294, %v294
  %v311 = vpack.c.b16 %v295, %v295
  %v312 = vpack.c.b16 %v296, %v296
  %v313 = vpack.c.b16 %v297, %v297
  %v314 = vpack.c.b16 %v298, %v298
  %v315 = vpack.c.b16 %v299, %v299
  %v316 = vpack.c.b16 %v300, %v300
  %vm333 = vcmask 125952
  %334 = vst.msk [vmem:[%s4] sm:$0xf] %vm333, %v301
  %335 = vst.msk [vmem:[%s4 + $0x4] sm:$0xf] %vm333, %v302
  %336 = vst.msk [vmem:[%s4 + $0x8] sm:$0xf] %vm333, %v303
  %337 = vst.msk [vmem:[%s4 + $0xc] sm:$0xf] %vm333, %v304
  %338 = vst.msk [vmem:[%s4 + $0x10] sm:$0xf] %vm333, %v305
  %339 = vst.msk [vmem:[%s4 + $0x14] sm:$0xf] %vm333, %v306
  %340 = vst.msk [vmem:[%s4 + $0x18] sm:$0xf] %vm333, %v307
  %341 = vst.msk [vmem:[%s4 + $0x1c] sm:$0xf] %vm333, %v308
  %342 = vst.msk [vmem:[%s4 + $0x20] sm:$0xf] %vm333, %v309
  %343 = vst.msk [vmem:[%s4 + $0x24] sm:$0xf] %vm333, %v310
  %344 = vst.msk [vmem:[%s4 + $0x28] sm:$0xf] %vm333, %v311
  %345 = vst.msk [vmem:[%s4 + $0x2c] sm:$0xf] %vm333, %v312
  %346 = vst.msk [vmem:[%s4 + $0x30] sm:$0xf] %vm333, %v313
  %347 = vst.msk [vmem:[%s4 + $0x34] sm:$0xf] %vm333, %v314
  %348 = vst.msk [vmem:[%s4 + $0x38] sm:$0xf] %vm333, %v315
  %349 = vst.msk [vmem:[%s4 + $0x3c] sm:$0xf] %vm333, %v316
  // Predicated region
  $region18: #{tpu_custom_call.1} parent=0 // pred_check
    _
  $region19: #{tpu_custom_call.1} parent=0 // pred_check_branch
    %351 = sbr.rel (0) target = $region21
  $region20: #{tpu_custom_call.1} parent=0 // pred_region
    _
  $region21: #{tpu_custom_call.1} parent=0 // pred_fallthru
    _
  // Predicated region
  $region22: #{tpu_custom_call.1} parent=0 // pred_check
    _
  $region23: #{tpu_custom_call.1} parent=0 // pred_check_branch
    %353 = sbr.rel (0) target = $region25
  $region24: #{tpu_custom_call.1} parent=0 // pred_region
    _
  $region25: #{tpu_custom_call.1} parent=0 // pred_fallthru
    _

</llo_original>
